<compile_context>
chip_gen: v7x
topology: tpu7x:2x2x1
jax: 0.10.0
libtpu: 0.0.40
codegen_flags: <defaults>
</compile_context>

<pallas_src>
import jax
import jax.numpy as jnp
from jax.experimental import pallas as pl
from jax.experimental.pallas import tpu as pltpu  # noqa: F401  (TPU backend)

# ---- model configuration (matches hidden_sizes=[32, 32] default) ----
INPUT_SIZE = 16
HIDDEN_SIZES = [32, 32]
assert all(h == HIDDEN_SIZES[0] for h in HIDDEN_SIZES), \
    "recurrence requires all hidden sizes equal"
NUM_STEPS = len(HIDDEN_SIZES)
HIDDEN = HIDDEN_SIZES[0]
BATCH = 8
SEQ = NUM_STEPS * INPUT_SIZE       # inputs last-dim length

# ---- packed / padded layout ----
H_PAD = 128                         # lane-dense hidden dimension
WX_OFF = 0                          # rows [0, INPUT_SIZE)        : wx
WH_OFF = INPUT_SIZE                 # rows [16, 16 + H_PAD)       : wh (padded)
BIAS_ROW = INPUT_SIZE + H_PAD       # row 144                     : bias
PACK_ROWS = INPUT_SIZE + H_PAD + 8  # 152 (round bias block to 8 sublanes)


def vanila_rnn_kernel(x_ref, w_ref, o_ref):
    """Whole RNN unrolled inside one kernel invocation (small sizes, fits VMEM).

    x_ref : (B, SEQ)                     f32
    w_ref : (NUM_STEPS, PACK_ROWS, H_PAD) f32  packed [wx | wh | bias], zero-padded
    o_ref : (B, H_PAD)                   f32  (real result in lanes [0, HIDDEN))
    """
    B = x_ref.shape[0]

    h = None  # context; None encodes "all zeros" at step 0 (skip recurrent matmul)
    for i in range(NUM_STEPS):                         # static unroll (trace-time)
        xi = x_ref[:, i * INPUT_SIZE:(i + 1) * INPUT_SIZE]
        o = jnp.dot(xi, w_ref[i, WX_OFF:WX_OFF + INPUT_SIZE, :],
                    preferred_element_type=jnp.float32)
        if h is not None:
            o = o + jnp.dot(h, w_ref[i, WH_OFF:WH_OFF + H_PAD, :],
                            preferred_element_type=jnp.float32)
        o = o + w_ref[i, BIAS_ROW:BIAS_ROW + 1, :]     # row-broadcast bias

        if i == NUM_STEPS - 1:
            # output nonlinearity: softmax over the REAL hidden lanes only
            lane = jax.lax.broadcasted_iota(jnp.int32, (B, H_PAD), 1)
            valid = lane < HIDDEN
            o_m = jnp.where(valid, o, -1e30)           # padded lanes -> -inf-ish
            m = jnp.max(o_m, axis=-1, keepdims=True)
            e = jnp.exp(o_m - m)                       # padded lanes underflow to 0
            denom = jnp.sum(e, axis=-1, keepdims=True)
            h = e * pl.reciprocal(denom, approx=True)  # EUP vrcp, ~free
        else:
            # hidden nonlinearity: relu (padded lanes are exactly 0, stay 0)
            h = jnp.maximum(o, 0.0)

    o_ref[...] = h


def pack_params(wx, wh, b):
    """One-time layout step: fold wx, wh, bias into a single lane-dense blob."""
    w = jnp.zeros((NUM_STEPS, PACK_ROWS, H_PAD), jnp.float32)
    w = w.at[:, WX_OFF:WX_OFF + INPUT_SIZE, :HIDDEN].set(wx)
    w = w.at[:, WH_OFF:WH_OFF + HIDDEN, :HIDDEN].set(wh)
    w = w.at[:, BIAS_ROW, :HIDDEN].set(b)
    return w


def vanila_rnn(x, w_packed):
    B = x.shape[0]
    out_padded = pl.pallas_call(
        vanila_rnn_kernel,
        out_shape=jax.ShapeDtypeStruct((B, H_PAD), jnp.float32),
        in_specs=[
            pl.BlockSpec(x.shape, lambda: (0, 0)),
            pl.BlockSpec(w_packed.shape, lambda: (0, 0, 0)),
        ],
        out_specs=pl.BlockSpec((B, H_PAD), lambda: (0, 0)),
    )(x, w_packed)
    return out_padded[:, :HIDDEN]


def reference(x, wx, wh, b):
    """Pure-JAX reference implementing the same forward pass (exact softmax)."""
    h = jnp.zeros((x.shape[0], HIDDEN), jnp.float32)
    for i in range(NUM_STEPS):
        xi = x[:, i * INPUT_SIZE:(i + 1) * INPUT_SIZE]
        o = xi @ wx[i] + h @ wh[i] + b[i]
        if i == NUM_STEPS - 1:
            h = jax.nn.softmax(o, axis=-1)
        else:
            h = jax.nn.relu(o)
    return h


if __name__ == "__main__":
    key = jax.random.PRNGKey(0)
    kx, kwx, kwh, kb = jax.random.split(key, 4)

    in_dim = INPUT_SIZE + HIDDEN
    bound = 1.0 / jnp.sqrt(jnp.float32(in_dim))  # PyTorch nn.Linear-style uniform init

    x = jax.random.normal(kx, (BATCH, SEQ), dtype=jnp.float32)
    wx = jax.random.uniform(kwx, (NUM_STEPS, INPUT_SIZE, HIDDEN),
                            minval=-bound, maxval=bound, dtype=jnp.float32)
    wh = jax.random.uniform(kwh, (NUM_STEPS, HIDDEN, HIDDEN),
                            minval=-bound, maxval=bound, dtype=jnp.float32)
    b = jax.random.uniform(kb, (NUM_STEPS, HIDDEN),
                           minval=-bound, maxval=bound, dtype=jnp.float32)

    w_packed = jax.block_until_ready(pack_params(wx, wh, b))  # one-time model setup

    out = jax.block_until_ready(vanila_rnn(x, w_packed))
    ref = reference(x, wx, wh, b)

    assert out.shape == (BATCH, HIDDEN)
    # tolerance relaxed vs 1e-5 because the softmax denominator uses the
    # approximate (EUP) reciprocal.
    assert jnp.allclose(out, ref, atol=1e-3, rtol=1e-3), "mismatch vs reference"
    print("KERNEL_OK")
</pallas_src>

<mosaic_0001>
module attributes {stable_mosaic.version = 11 : i64} {
  func.func @vanila_rnn_kernel(%arg0: memref<8x32xf32, #tpu.memory_space<vmem>>, %arg1: memref<2x152x128xf32, #tpu.memory_space<vmem>>, %arg2: memref<8x128xf32, #tpu.memory_space<vmem>>) attributes {dimension_semantics = [], scalar_prefetch = 0 : i64, scratch_operands = 0 : i64, tpu.core_type = #tpu.core_type<tc>} {
    %c0 = arith.constant 0 : index
    %c0_0 = arith.constant 0 : index
    %0 = vector.load %arg0[%c0, %c0_0] : memref<8x32xf32, #tpu.memory_space<vmem>>, vector<8x16xf32>
    %c0_1 = arith.constant 0 : index
    %c0_2 = arith.constant 0 : index
    %c0_3 = arith.constant 0 : index
    %1 = vector.load %arg1[%c0_1, %c0_2, %c0_3] : memref<2x152x128xf32, #tpu.memory_space<vmem>>, vector<1x16x128xf32>
    %2 = vector.shape_cast %1 : vector<1x16x128xf32> to vector<16x128xf32>
    %cst = arith.constant dense<0.000000e+00> : vector<8x128xf32>
    %3 = tpu.matmul %0, %2, %cst {dimension_numbers = #tpu.dot_dimension_numbers<[1], [0], [0], [1], [0, 0, 1, 1], [], []>} : vector<8x16xf32>, vector<16x128xf32>, vector<8x128xf32> -> vector<8x128xf32>
    %c0_4 = arith.constant 0 : index
    %c144 = arith.constant 144 : index
    %c0_5 = arith.constant 0 : index
    %4 = vector.load %arg1[%c0_4, %c144, %c0_5] : memref<2x152x128xf32, #tpu.memory_space<vmem>>, vector<1x1x128xf32>
    %5 = vector.shape_cast %4 : vector<1x1x128xf32> to vector<1x128xf32>
    %6 = vector.broadcast %5 : vector<1x128xf32> to vector<8x128xf32>
    %7 = arith.addf %3, %6 : vector<8x128xf32>
    %cst_6 = arith.constant 0.000000e+00 : f32
    %8 = vector.broadcast %cst_6 : f32 to vector<8x128xf32>
    %9 = arith.maximumf %7, %8 : vector<8x128xf32>
    %c0_7 = arith.constant 0 : index
    %c16 = arith.constant 16 : index
    %10 = vector.load %arg0[%c0_7, %c16] : memref<8x32xf32, #tpu.memory_space<vmem>>, vector<8x16xf32>
    %c1 = arith.constant 1 : index
    %c0_8 = arith.constant 0 : index
    %c0_9 = arith.constant 0 : index
    %11 = vector.load %arg1[%c1, %c0_8, %c0_9] : memref<2x152x128xf32, #tpu.memory_space<vmem>>, vector<1x16x128xf32>
    %12 = vector.shape_cast %11 : vector<1x16x128xf32> to vector<16x128xf32>
    %cst_10 = arith.constant dense<0.000000e+00> : vector<8x128xf32>
    %13 = tpu.matmul %10, %12, %cst_10 {dimension_numbers = #tpu.dot_dimension_numbers<[1], [0], [0], [1], [0, 0, 1, 1], [], []>} : vector<8x16xf32>, vector<16x128xf32>, vector<8x128xf32> -> vector<8x128xf32>
    %c1_11 = arith.constant 1 : index
    %c16_12 = arith.constant 16 : index
    %c0_13 = arith.constant 0 : index
    %14 = vector.load %arg1[%c1_11, %c16_12, %c0_13] : memref<2x152x128xf32, #tpu.memory_space<vmem>>, vector<1x128x128xf32>
    %15 = vector.shape_cast %14 : vector<1x128x128xf32> to vector<128x128xf32>
    %cst_14 = arith.constant dense<0.000000e+00> : vector<8x128xf32>
    %16 = tpu.matmul %9, %15, %cst_14 {dimension_numbers = #tpu.dot_dimension_numbers<[1], [0], [0], [1], [0, 0, 1, 1], [], []>} : vector<8x128xf32>, vector<128x128xf32>, vector<8x128xf32> -> vector<8x128xf32>
    %17 = arith.addf %13, %16 : vector<8x128xf32>
    %c1_15 = arith.constant 1 : index
    %c144_16 = arith.constant 144 : index
    %c0_17 = arith.constant 0 : index
    %18 = vector.load %arg1[%c1_15, %c144_16, %c0_17] : memref<2x152x128xf32, #tpu.memory_space<vmem>>, vector<1x1x128xf32>
    %19 = vector.shape_cast %18 : vector<1x1x128xf32> to vector<1x128xf32>
    %20 = vector.broadcast %19 : vector<1x128xf32> to vector<8x128xf32>
    %21 = arith.addf %17, %20 : vector<8x128xf32>
    %22 = tpu.iota {dimensions = array<i32: 1>} : vector<8x128xi32>
    %c32_i32 = arith.constant 32 : i32
    %23 = vector.broadcast %c32_i32 : i32 to vector<8x128xi32>
    %24 = arith.cmpi slt, %22, %23 : vector<8x128xi32>
    %cst_18 = arith.constant -1.000000e+30 : f32
    %25 = vector.broadcast %cst_18 : f32 to vector<8x128xf32>
    %26 = arith.select %24, %21, %25 : vector<8x128xi1>, vector<8x128xf32>
    %cst_19 = arith.constant dense<0xFF800000> : vector<8xf32>
    %27 = vector.multi_reduction <maximumf>, %26, %cst_19 [1] : vector<8x128xf32> to vector<8xf32>
    %28 = vector.shape_cast %27 : vector<8xf32> to vector<8x1xf32>
    %29 = vector.broadcast %28 : vector<8x1xf32> to vector<8x128xf32>
    %30 = arith.subf %26, %29 : vector<8x128xf32>
    %31 = math.exp %30 : vector<8x128xf32>
    %cst_20 = arith.constant dense<0.000000e+00> : vector<8xf32>
    %32 = vector.multi_reduction <add>, %31, %cst_20 [1] : vector<8x128xf32> to vector<8xf32>
    %33 = vector.shape_cast %32 : vector<8xf32> to vector<8x1xf32>
    %34 = tpu.reciprocal %33 {approx = true} : vector<8x1xf32> -> vector<8x1xf32>
    %35 = vector.broadcast %34 : vector<8x1xf32> to vector<8x128xf32>
    %36 = arith.mulf %31, %35 : vector<8x128xf32>
    %c0_21 = arith.constant 0 : index
    %c0_22 = arith.constant 0 : index
    %37 = vector.load %arg2[%c0_21, %c0_22] : memref<8x128xf32, #tpu.memory_space<vmem>>, vector<8x128xf32>
    tpu.vector_store %arg2[%c0_21, %c0_22], %36 {strides = array<i32>} : memref<8x128xf32, #tpu.memory_space<vmem>>, vector<8x128xf32>,
    return
  }
}

</mosaic_0001>

<llo_original>
// kernel: tpu_custom_call.1
$region0: #{tpu_custom_call.1}
  #allocation0 [shape = 'u32[]', space=smem, size = 0x4, offset = 0x4, fixed_abs, tag = 'smem constant byte address 0x4 - core index']
  #allocation1 [shape = 'u32[144,128]{1,0:T(1,128)}', space=vmem, size = 0x12000, scoped, tag = 'internal scratch']
  %s0 = inlined_call_operand.hbm [shape: f32[8,32], index: 0, kind: input, shape index: {}]
  %s1 = inlined_call_operand.hbm [shape: f32[2,152,128], index: 1, kind: input, shape index: {}]
  %s2 = inlined_call_operand.hbm [shape: f32[8,128], index: 2, kind: output, shape index: {}]
  %s3 = sld [smem:[#allocation0]]
  $region26: #{tpu_custom_call.1} parent=0
    _
  %s5 = ssub.s32 1, %s3
  %s6 = scalar_select 0, %s5, %s3
  $region1: #{tpu_custom_call.1} parent=0
    #allocation2 [shape = 'u8[4096]{0}', space=vmem, size = 0x1000, scoped, tag = 'input window, operand 0, single buffered']
    #allocation3 [shape = 's32[1]{0}', space=sflag, size = 0x4, scoped, tag = 'scoped memory for tpu_custom_call.1']
    #allocation4 [shape = 's32[1]{0}', space=sflag, size = 0x4, scoped, tag = 'scoped memory for tpu_custom_call.1']
    #allocation5 [shape = 'u8[155648]{0}', space=vmem, size = 0x26000, scoped, tag = 'input window, operand 1, single buffered']
    #allocation6 [shape = 's32[1]{0}', space=sflag, size = 0x4, scoped, tag = 'scoped memory for tpu_custom_call.1']
    #allocation7 [shape = 'u8[4096]{0}', space=vmem, size = 0x1000, scoped, tag = 'output window, operand 0, single buffered']
    %7 = vsyncpa [#allocation3], 0
    %8 = vsyncpa [#allocation6], 0
    %9 = vsyncpa [#allocation4], 0
    // Predicated region
    $region2: #{tpu_custom_call.1} parent=1 // pred_check
      _
    $region3: #{tpu_custom_call.1} parent=1 // pred_check_branch
      %11 = sbr.rel (0) target = $region5
    $region4: #{tpu_custom_call.1} parent=1 // pred_region
      %s13 = ssub.s32 128, 128
      %14 = vsyncadd [#allocation3], %s13
      %s16 = sshll.u32 [#allocation2], 4
      %s17 = int_to_ptr.vmem [resolvable:$true] %s16
      %19 = dma.hbm_to_vmem [thread:$0]  %s0, 128, %s17, [#allocation3]
    $region5: #{tpu_custom_call.1} parent=1 // pred_fallthru
      _
    // Predicated region
    $region6: #{tpu_custom_call.1} parent=1 // pred_check
      _
    $region7: #{tpu_custom_call.1} parent=1 // pred_check_branch
      %21 = sbr.rel (0) target = $region9
    $region8: #{tpu_custom_call.1} parent=1 // pred_region
      %s23 = ssub.s32 4864, 4864
      %24 = vsyncadd [#allocation6], %s23
      %s25 = sshll.u32 [#allocation5], 4
      %s26 = int_to_ptr.vmem [resolvable:$true] %s25
      %31 = dma.hbm_to_vmem [thread:$0]  %s1, 4864, %s26, [#allocation6], 128, 128, 8
    $region9: #{tpu_custom_call.1} parent=1 // pred_fallthru
      _
    // Predicated region
    $region10: #{tpu_custom_call.1} parent=1 // pred_check
      _
    $region11: #{tpu_custom_call.1} parent=1 // pred_check_branch
      %33 = sbr.rel (0) target = $region13
    $region12: #{tpu_custom_call.1} parent=1 // pred_region
      %34 = dma.done [#allocation3], 128
    $region13: #{tpu_custom_call.1} parent=1 // pred_fallthru
      _
    // Predicated region
    $region14: #{tpu_custom_call.1} parent=1 // pred_check
      _
    $region15: #{tpu_custom_call.1} parent=1 // pred_check_branch
      %36 = sbr.rel (0) target = $region17
    $region16: #{tpu_custom_call.1} parent=1 // pred_region
      %37 = dma.done [#allocation6], 4864
    $region17: #{tpu_custom_call.1} parent=1 // pred_fallthru
      _
    %v38 = vld [vmem:[#allocation2] sm:$0xff]
    %v39 = vld [vmem:[#allocation5] sm:$0xff]
    %v40 = vld [vmem:[#allocation5 + $0x8] sm:$0xff]
    %v41 = vld [vmem:[#allocation5 + $0x90] sm:$0x1]
    %v42 = vlaneseq
    %v43 = vshrl.u32 %v42, 7
    %v44 = vsub.s32 0, %v43
    %v45 = vrot.slane %v41, %v44
    %vm46 = vcmask 130048
    %v48 = vsel %vm46, %v38, 0
    %50 = vmatprep.subr.mxu0 0.0
    %51 = vmatpush1.msra.mxu0 %v39
    %52 = vmatprep.subr.mxu0 0.0
    %53 = vmatpush1.msra.mxu0 %v40
    %54 = vmatprep.subr.mxu0 0.0
    %55 = vmatpush1.msra.mxu0 0.0
    %56 = vmatprep.subr.mxu0 0.0
    %57 = vmatpush1.msra.mxu0 0.0
    %58 = vmatprep.subr.mxu0 0.0
    %59 = vmatpush1.msra.mxu0 0.0
    %60 = vmatprep.subr.mxu0 0.0
    %61 = vmatpush1.msra.mxu0 0.0
    %62 = vmatprep.subr.mxu0 0.0
    %63 = vmatpush1.msra.mxu0 0.0
    %64 = vmatprep.subr.mxu0 0.0
    %65 = vmatpush1.msra.mxu0 0.0
    %66 = vmatprep.subr.mxu0 0.0
    %67 = vmatpush1.msra.mxu0 0.0
    %68 = vmatprep.subr.mxu0 0.0
    %69 = vmatpush1.msra.mxu0 0.0
    %70 = vmatprep.subr.mxu0 0.0
    %71 = vmatpush1.msra.mxu0 0.0
    %72 = vmatprep.subr.mxu0 0.0
    %73 = vmatpush1.msra.mxu0 0.0
    %74 = vmatprep.subr.mxu0 0.0
    %75 = vmatpush1.msra.mxu0 0.0
    %76 = vmatprep.subr.mxu0 0.0
    %77 = vmatpush1.msra.mxu0 0.0
    %78 = vmatprep.subr.mxu0 0.0
    %79 = vmatpush1.msra.mxu0 0.0
    %80 = vmatprep.subr.mxu0 0.0
    %81 = vmatpush1.msra.mxu0 0.0
    %82 = vmatprep.subr.mxu0 0.0
    %83 = vmatpush1.msra.mxu0 0.0
    %84 = vmatprep.subr.mxu0 0.0
    %85 = vmatpush1.msra.mxu0 0.0
    %86 = vmatprep.subr.mxu0 0.0
    %87 = vmatpush1.msra.mxu0 0.0
    %88 = vmatprep.subr.mxu0 0.0
    %89 = vmatpush1.msra.mxu0 0.0
    %90 = vmatprep.subr.mxu0 0.0
    %91 = vmatpush1.msra.mxu0 0.0
    %92 = vmatprep.subr.mxu0 0.0
    %93 = vmatpush1.msra.mxu0 0.0
    %94 = vmatprep.subr.mxu0 0.0
    %95 = vmatpush1.msra.mxu0 0.0
    %96 = vmatprep.subr.mxu0 0.0
    %97 = vmatpush1.msra.mxu0 0.0
    %98 = vmatprep.subr.mxu0 0.0
    %99 = vmatpush1.msra.mxu0 0.0
    %100 = vmatprep.subr.mxu0 0.0
    %101 = vmatpush1.msra.mxu0 0.0
    %102 = vmatprep.subr.mxu0 0.0
    %103 = vmatpush1.msra.mxu0 0.0
    %104 = vmatprep.subr.mxu0 0.0
    %105 = vmatpush1.msra.mxu0 0.0
    %106 = vmatprep.subr.mxu0 0.0
    %107 = vmatpush1.msra.mxu0 0.0
    %108 = vmatprep.subr.mxu0 0.0
    %109 = vmatpush1.msra.mxu0 0.0
    %110 = vmatprep.subr.mxu0 0.0
    %111 = vmatpush1.msra.mxu0 0.0
    %112 = vmatprep.subr.mxu0 0.0
    %113 = vmatpush1.msra.mxu0 0.0
    %114 = vmatprep.mubr.f32.mxu0 0.0
    %115 = vmatmul.mubr.f32.gmra.mrb[0].mxu0 %v48
    %v116 = vpop.f32.mrb[0].mxu0
    %v117 = vadd.f32 %v45, %v116
    %v118 = vpop.f32.mrb[0].mxu0
    %119 = vdwg.mxu0
    %v120 = vmax.f32 %v117, 0.0
    %s121 = scalar_lea.vmem [#allocation5], 152
    %v122 = vld [vmem:[%s121] sm:$0xff]
    %v123 = vld [vmem:[%s121 + $0x8] sm:$0xff]
    %v124 = vld [vmem:[%s121 + $0x10] sm:$0xff]
    %v125 = vld [vmem:[%s121 + $0x18] sm:$0xff]
    %v126 = vld [vmem:[%s121 + $0x20] sm:$0xff]
    %v127 = vld [vmem:[%s121 + $0x28] sm:$0xff]
    %v128 = vld [vmem:[%s121 + $0x30] sm:$0xff]
    %v129 = vld [vmem:[%s121 + $0x38] sm:$0xff]
    %v130 = vld [vmem:[%s121 + $0x40] sm:$0xff]
    %v131 = vld [vmem:[%s121 + $0x48] sm:$0xff]
    %v132 = vld [vmem:[%s121 + $0x50] sm:$0xff]
    %v133 = vld [vmem:[%s121 + $0x58] sm:$0xff]
    %v134 = vld [vmem:[%s121 + $0x60] sm:$0xff]
    %v135 = vld [vmem:[%s121 + $0x68] sm:$0xff]
    %v136 = vld [vmem:[%s121 + $0x70] sm:$0xff]
    %v137 = vld [vmem:[%s121 + $0x78] sm:$0xff]
    %v138 = vld [vmem:[%s121 + $0x80] sm:$0xff]
    %v139 = vld [vmem:[%s121 + $0x88] sm:$0xff]
    %140 = vmatprep.subr.mxu0 0.0
    %141 = vmatpush1.msra.mxu0 %v124
    %142 = vmatprep.subr.mxu0 0.0
    %143 = vmatpush1.msra.mxu0 %v125
    %144 = vmatprep.subr.mxu0 0.0
    %145 = vmatpush1.msra.mxu0 %v126
    %146 = vmatprep.subr.mxu0 0.0
    %147 = vmatpush1.msra.mxu0 %v127
    %148 = vmatprep.subr.mxu0 0.0
    %149 = vmatpush1.msra.mxu0 %v128
    %150 = vmatprep.subr.mxu0 0.0
    %151 = vmatpush1.msra.mxu0 %v129
    %152 = vmatprep.subr.mxu0 0.0
    %153 = vmatpush1.msra.mxu0 %v130
    %154 = vmatprep.subr.mxu0 0.0
    %155 = vmatpush1.msra.mxu0 %v131
    %156 = vmatprep.subr.mxu0 0.0
    %157 = vmatpush1.msra.mxu0 %v132
    %158 = vmatprep.subr.mxu0 0.0
    %159 = vmatpush1.msra.mxu0 %v133
    %160 = vmatprep.subr.mxu0 0.0
    %161 = vmatpush1.msra.mxu0 %v134
    %162 = vmatprep.subr.mxu0 0.0
    %163 = vmatpush1.msra.mxu0 %v135
    %164 = vmatprep.subr.mxu0 0.0
    %165 = vmatpush1.msra.mxu0 %v136
    %166 = vmatprep.subr.mxu0 0.0
    %167 = vmatpush1.msra.mxu0 %v137
    %168 = vmatprep.subr.mxu0 0.0
    %169 = vmatpush1.msra.mxu0 %v138
    %170 = vmatprep.subr.mxu0 0.0
    %171 = vmatpush1.msra.mxu0 %v139
    %172 = vmatprep.subr.mxu0 0.0
    %173 = vmatpush1.msra.mxu0 0.0
    %174 = vmatprep.subr.mxu0 0.0
    %175 = vmatpush1.msra.mxu0 0.0
    %176 = vmatprep.subr.mxu0 0.0
    %177 = vmatpush1.msra.mxu0 0.0
    %178 = vmatprep.subr.mxu0 0.0
    %179 = vmatpush1.msra.mxu0 0.0
    %180 = vmatprep.subr.mxu0 0.0
    %181 = vmatpush1.msra.mxu0 0.0
    %182 = vmatprep.subr.mxu0 0.0
    %183 = vmatpush1.msra.mxu0 0.0
    %184 = vmatprep.subr.mxu0 0.0
    %185 = vmatpush1.msra.mxu0 0.0
    %186 = vmatprep.subr.mxu0 0.0
    %187 = vmatpush1.msra.mxu0 0.0
    %188 = vmatprep.subr.mxu0 0.0
    %189 = vmatpush1.msra.mxu0 0.0
    %190 = vmatprep.subr.mxu0 0.0
    %191 = vmatpush1.msra.mxu0 0.0
    %192 = vmatprep.subr.mxu0 0.0
    %193 = vmatpush1.msra.mxu0 0.0
    %194 = vmatprep.subr.mxu0 0.0
    %195 = vmatpush1.msra.mxu0 0.0
    %196 = vmatprep.subr.mxu0 0.0
    %197 = vmatpush1.msra.mxu0 0.0
    %198 = vmatprep.subr.mxu0 0.0
    %199 = vmatpush1.msra.mxu0 0.0
    %200 = vmatprep.subr.mxu0 0.0
    %201 = vmatpush1.msra.mxu0 0.0
    %202 = vmatprep.subr.mxu0 0.0
    %203 = vmatpush1.msra.mxu0 0.0
    %204 = vmatprep.mubr.f32.mxu0 0.0
    %205 = vmatmul.mubr.f32.gmra.mrb[0].mxu0 %v120
    %v206 = vpop.f32.mrb[0].mxu0
    %v207 = vadd.f32 0.0, %v206
    %v208 = vpop.f32.mrb[0].mxu0
    %209 = vdwg.mxu0
    %210 = vrot.lane.b32.xlu0 %v38, 112
    %v211 = vpop.permute.xlu0 %210
    %v212 = vsel %vm46, %v211, 0
    %214 = vmatprep.subr.mxu0 0.0
    %215 = vmatpush1.msra.mxu0 %v122
    %216 = vmatprep.subr.mxu0 0.0
    %217 = vmatpush1.msra.mxu0 %v123
    %218 = vmatprep.subr.mxu0 0.0
    %219 = vmatpush1.msra.mxu0 0.0
    %220 = vmatprep.subr.mxu0 0.0
    %221 = vmatpush1.msra.mxu0 0.0
    %222 = vmatprep.subr.mxu0 0.0
    %223 = vmatpush1.msra.mxu0 0.0
    %224 = vmatprep.subr.mxu0 0.0
    %225 = vmatpush1.msra.mxu0 0.0
    %226 = vmatprep.subr.mxu0 0.0
    %227 = vmatpush1.msra.mxu0 0.0
    %228 = vmatprep.subr.mxu0 0.0
    %229 = vmatpush1.msra.mxu0 0.0
    %230 = vmatprep.subr.mxu0 0.0
    %231 = vmatpush1.msra.mxu0 0.0
    %232 = vmatprep.subr.mxu0 0.0
    %233 = vmatpush1.msra.mxu0 0.0
    %234 = vmatprep.subr.mxu0 0.0
    %235 = vmatpush1.msra.mxu0 0.0
    %236 = vmatprep.subr.mxu0 0.0
    %237 = vmatpush1.msra.mxu0 0.0
    %238 = vmatprep.subr.mxu0 0.0
    %239 = vmatpush1.msra.mxu0 0.0
    %240 = vmatprep.subr.mxu0 0.0
    %241 = vmatpush1.msra.mxu0 0.0
    %242 = vmatprep.subr.mxu0 0.0
    %243 = vmatpush1.msra.mxu0 0.0
    %244 = vmatprep.subr.mxu0 0.0
    %245 = vmatpush1.msra.mxu0 0.0
    %246 = vmatprep.subr.mxu0 0.0
    %247 = vmatpush1.msra.mxu0 0.0
    %248 = vmatprep.subr.mxu0 0.0
    %249 = vmatpush1.msra.mxu0 0.0
    %250 = vmatprep.subr.mxu0 0.0
    %251 = vmatpush1.msra.mxu0 0.0
    %252 = vmatprep.subr.mxu0 0.0
    %253 = vmatpush1.msra.mxu0 0.0
    %254 = vmatprep.subr.mxu0 0.0
    %255 = vmatpush1.msra.mxu0 0.0
    %256 = vmatprep.subr.mxu0 0.0
    %257 = vmatpush1.msra.mxu0 0.0
    %258 = vmatprep.subr.mxu0 0.0
    %259 = vmatpush1.msra.mxu0 0.0
    %260 = vmatprep.subr.mxu0 0.0
    %261 = vmatpush1.msra.mxu0 0.0
    %262 = vmatprep.subr.mxu0 0.0
    %263 = vmatpush1.msra.mxu0 0.0
    %264 = vmatprep.subr.mxu0 0.0
    %265 = vmatpush1.msra.mxu0 0.0
    %266 = vmatprep.subr.mxu0 0.0
    %267 = vmatpush1.msra.mxu0 0.0
    %268 = vmatprep.subr.mxu0 0.0
    %269 = vmatpush1.msra.mxu0 0.0
    %270 = vmatprep.subr.mxu0 0.0
    %271 = vmatpush1.msra.mxu0 0.0
    %272 = vmatprep.subr.mxu0 0.0
    %273 = vmatpush1.msra.mxu0 0.0
    %274 = vmatprep.subr.mxu0 0.0
    %275 = vmatpush1.msra.mxu0 0.0
    %276 = vmatprep.subr.mxu0 0.0
    %277 = vmatpush1.msra.mxu0 0.0
    %278 = vmatprep.mubr.f32.mxu0 0.0
    %279 = vmatmul.mubr.f32.gmra.mrb[0].mxu0 %v212
    %v280 = vpop.f32.mrb[0].mxu0
    %v281 = vadd.f32 %v207, %v280
    %v282 = vpop.f32.mrb[0].mxu0
    %283 = vdwg.mxu0
    %v284 = vld [vmem:[%s121 + $0x90] sm:$0x1]
    %v285 = vlaneseq
    %v286 = vshrl.u32 %v285, 7
    %v287 = vsub.s32 0, %v286
    %v288 = vrot.slane %v284, %v287
    %v289 = vadd.f32 %v281, %v288
    %v290 = vlaneseq
    %v291 = vand.u32 %v290, 127
    %vm292 = vcmp.lt.s32.totalorder %v291, 32
    %v293 = vsel %vm292, %v289, -1e+30
    %294 = vmax.xlane.f32.xlu0 %v293
    %v295 = vpop.xlane.xlu0 %294
    %v296 = vsub.f32 %v293, %v295
    %v297 = vmul.f32 %v296, 1.442695
    %v298 = vpow.pop %v297
    %299 = vadd.xlane.f32.xlu0 %v298
    %v300 = vpop.xlane.xlu0 %299
    %v301 = vrcp.pop %v300
    %v302 = vmul.f32 %v298, %v301
    %303 = vst [vmem:[#allocation7] sm:$0xff] %v302
    // Predicated region
    $region18: #{tpu_custom_call.1} parent=1 // pred_check
      _
    $region19: #{tpu_custom_call.1} parent=1 // pred_check_branch
      %305 = sbr.rel (0) target = $region21
    $region20: #{tpu_custom_call.1} parent=1 // pred_region
      %s307 = ssub.s32 128, 128
      %308 = vsyncadd [#allocation4], %s307
      %s310 = sshll.u32 [#allocation7], 4
      %s311 = int_to_ptr.vmem [resolvable:$true] %s310
      %313 = dma.vmem_to_hbm [thread:$0]  %s311, 128, %s2, [#allocation4]
    $region21: #{tpu_custom_call.1} parent=1 // pred_fallthru
      _
    // Predicated region
    $region22: #{tpu_custom_call.1} parent=1 // pred_check
      _
    $region23: #{tpu_custom_call.1} parent=1 // pred_check_branch
      %315 = sbr.rel (0) target = $region25
    $region24: #{tpu_custom_call.1} parent=1 // pred_region
      %316 = dma.done [#allocation4], 128
    $region25: #{tpu_custom_call.1} parent=1 // pred_fallthru
      _
    %317 = vsyncpa [#allocation3], 1
    %318 = vsyncpa [#allocation6], 1
    %319 = vsyncpa [#allocation4], 1

</llo_original>
